<compile_context>
chip_gen: v6e
topology: v6e:2x2x1
jax: 0.10.0
libtpu: 0.0.40
codegen_flags: <defaults>
</compile_context>

<pallas_src>
import math

import jax
import jax.numpy as jnp
from jax.experimental import pallas as pl
from jax.experimental.pallas import tpu as pltpu


def _actor_kernel(state_ref, p1_ref, p2_ref, out_ref):
    """Single-shot kernel; everything resident in VMEM.

    state_ref: (nS, B)          p1_ref: (hidden, nS+1)  = [W1 | b1]
    p2_ref:    (nA, hidden+1)   = 100 * [W2 | b2]
    out_ref:   (nA, B)          = transposed output, batch on lanes
    """
    nS = state_ref.shape[0]
    hidden = p1_ref.shape[0]

    state = state_ref[...]                     # (nS, B)
    p1 = p1_ref[...]                           # (hidden, nS+1)
    p2 = p2_ref[...]                           # (nA, hidden+1)

    w1 = p1[:, :nS]                            # (hidden, nS)
    b1 = p1[:, nS:]                            # (hidden, 1)
    w2 = p2[:, :hidden]                        # (nA, hidden)   (already * 100)
    b2 = p2[:, hidden:]                        # (nA, 1)        (already * 100)

    # h^T = W1 @ state + b1 : MXU-native (M,K)x(K,N), no transposes anywhere.
    h = jnp.dot(w1, state, preferred_element_type=jnp.float32) + b1
    h = jnp.tanh(h)                            # (hidden, B)

    # out^T = (100*W2) @ h^T + 100*b2 : (nA, B), batch stays on the lane axis.
    out = jnp.dot(w2, h, preferred_element_type=jnp.float32) + b2
    out_ref[...] = out.astype(out_ref.dtype)


def actor_prepare_params(w1, b1, w2, b2):
    """One-time parameter packing (NOT per-call): [W | b] slabs, 100x folded in."""
    p1 = jnp.concatenate([w1, b1[:, None]], axis=1).astype(jnp.float32)
    p2 = (100.0 * jnp.concatenate([w2, b2[:, None]], axis=1)).astype(jnp.float32)
    return p1, p2


@jax.jit
def actor_forward(state, p1, p2):
    """state: (nS, B) float32.  Returns (B, nA) float32 (PyTorch output layout)."""
    _, B = state.shape
    nA = p2.shape[0]

    vmem = pltpu.MemorySpace.VMEM
    out_t = pl.pallas_call(
        _actor_kernel,
        out_shape=jax.ShapeDtypeStruct((nA, B), jnp.float32),
        in_specs=[
            pl.BlockSpec(memory_space=vmem),
            pl.BlockSpec(memory_space=vmem),
            pl.BlockSpec(memory_space=vmem),
        ],
        out_specs=pl.BlockSpec(memory_space=vmem),
    )(state, p1, p2)

    # Layout plumbing only: transposed compute kept the batch on lanes in-kernel.
    return out_t.T


def _xavier_uniform(key, fan_out, fan_in, gain=1.0):
    """Matches nn.init.xavier_uniform_ for a (fan_out, fan_in) Linear weight."""
    limit = gain * math.sqrt(6.0 / (fan_in + fan_out))
    return jax.random.uniform(key, (fan_out, fan_in), jnp.float32,
                              minval=-limit, maxval=limit)


if __name__ == "__main__":
    # Small shapes consistent with Actor(nS, nA, hidden).
    nS, nA, hidden, batch = 16, 4, 32, 8

    key = jax.random.PRNGKey(0)
    k_state, k_w1, k_b1, k_w2, k_b2 = jax.random.split(key, 5)

    # state is (nS, B): PyTorch forward() does state.T, producing a (B, nS) batch.
    state = jax.random.normal(k_state, (nS, batch), jnp.float32)

    w1 = _xavier_uniform(k_w1, hidden, nS)                     # fc1.weight
    b1 = jax.random.uniform(k_b1, (hidden,), jnp.float32,      # fc1.bias
                            minval=-1.0 / math.sqrt(nS),
                            maxval=1.0 / math.sqrt(nS))
    w2 = _xavier_uniform(k_w2, nA, hidden)                     # fc2.weight
    b2 = jax.random.uniform(k_b2, (nA,), jnp.float32,          # fc2.bias
                            minval=-1.0 / math.sqrt(hidden),
                            maxval=1.0 / math.sqrt(hidden))

    # One-time packing (fold 100x, concat biases); done at parameter setup.
    p1, p2 = actor_prepare_params(w1, b1, w2, b2)

    out = actor_forward(state, p1, p2)
    out = jax.block_until_ready(out)

    # Pure-JAX reference of the original module math.
    ref = 100.0 * (jnp.tanh(state.T @ w1.T + b1) @ w2.T + b2)
    assert out.shape == (batch, nA)
    assert jnp.allclose(out, ref, atol=1e-3, rtol=1e-3), float(
        jnp.max(jnp.abs(out - ref)))

    print("KERNEL_OK")
</pallas_src>

<mosaic_0001>
module attributes {stable_mosaic.version = 11 : i64} {
  func.func @_actor_kernel(%arg0: memref<16x8xf32, #tpu.memory_space<vmem>>, %arg1: memref<32x17xf32, #tpu.memory_space<vmem>>, %arg2: memref<4x33xf32, #tpu.memory_space<vmem>>, %arg3: memref<4x8xf32, #tpu.memory_space<vmem>>) attributes {dimension_semantics = [], scalar_prefetch = 0 : i64, scratch_operands = 0 : i64, tpu.core_type = #tpu.core_type<tc>} {
    %c0 = arith.constant 0 : index
    %c0_0 = arith.constant 0 : index
    %0 = vector.load %arg0[%c0, %c0_0] : memref<16x8xf32, #tpu.memory_space<vmem>>, vector<16x8xf32>
    %c0_1 = arith.constant 0 : index
    %c0_2 = arith.constant 0 : index
    %1 = vector.load %arg1[%c0_1, %c0_2] : memref<32x17xf32, #tpu.memory_space<vmem>>, vector<32x17xf32>
    %c0_3 = arith.constant 0 : index
    %c0_4 = arith.constant 0 : index
    %2 = vector.load %arg2[%c0_3, %c0_4] : memref<4x33xf32, #tpu.memory_space<vmem>>, vector<4x33xf32>
    %3 = vector.extract_strided_slice %1 {offsets = [0, 0], sizes = [32, 16], strides = [1, 1]} : vector<32x17xf32> to vector<32x16xf32>
    %4 = vector.extract_strided_slice %1 {offsets = [0, 16], sizes = [32, 1], strides = [1, 1]} : vector<32x17xf32> to vector<32x1xf32>
    %5 = vector.extract_strided_slice %2 {offsets = [0, 0], sizes = [4, 32], strides = [1, 1]} : vector<4x33xf32> to vector<4x32xf32>
    %6 = vector.extract_strided_slice %2 {offsets = [0, 32], sizes = [4, 1], strides = [1, 1]} : vector<4x33xf32> to vector<4x1xf32>
    %cst = arith.constant dense<0.000000e+00> : vector<32x8xf32>
    %7 = tpu.matmul %3, %0, %cst {dimension_numbers = #tpu.dot_dimension_numbers<[1], [0], [0], [1], [0, 0, 1, 1], [], []>} : vector<32x16xf32>, vector<16x8xf32>, vector<32x8xf32> -> vector<32x8xf32>
    %8 = vector.broadcast %4 : vector<32x1xf32> to vector<32x8xf32>
    %9 = arith.addf %7, %8 : vector<32x8xf32>
    %10 = math.tanh %9 : vector<32x8xf32>
    %cst_5 = arith.constant dense<0.000000e+00> : vector<4x8xf32>
    %11 = tpu.matmul %5, %10, %cst_5 {dimension_numbers = #tpu.dot_dimension_numbers<[1], [0], [0], [1], [0, 0, 1, 1], [], []>} : vector<4x32xf32>, vector<32x8xf32>, vector<4x8xf32> -> vector<4x8xf32>
    %12 = vector.broadcast %6 : vector<4x1xf32> to vector<4x8xf32>
    %13 = arith.addf %11, %12 : vector<4x8xf32>
    %c0_6 = arith.constant 0 : index
    %c0_7 = arith.constant 0 : index
    %14 = vector.load %arg3[%c0_6, %c0_7] : memref<4x8xf32, #tpu.memory_space<vmem>>, vector<4x8xf32>
    tpu.vector_store %arg3[%c0_6, %c0_7], %13 {strides = array<i32>} : memref<4x8xf32, #tpu.memory_space<vmem>>, vector<4x8xf32>,
    return
  }
}

</mosaic_0001>

<llo_original>
// kernel: actor_forward.1
$region0: #{actor_forward.1}
  #allocation0 [shape = 'u32[]', space=smem, size = 0x4, offset = 0x4, fixed_abs, tag = 'smem constant byte address 0x4 - core index']
  #allocation1 [shape = 'u32[144,128]{1,0:T(1,128)}', space=vmem, size = 0x12000, scoped, tag = 'internal scratch']
  %s0 = inlined_call_operand.vmem [shape: f32[16,8], index: 0, kind: input, shape index: {}]
  %s1 = inlined_call_operand.vmem [shape: f32[32,17], index: 1, kind: input, shape index: {}]
  %s2 = inlined_call_operand.vmem [shape: f32[4,33], index: 2, kind: input, shape index: {}]
  %s3 = inlined_call_operand.hbm [shape: f32[4,8], index: 3, kind: output, shape index: {}]
  %s4 = sld [smem:[#allocation0]]
  $region22: #{actor_forward.1} parent=0
    _
  %s6 = ssub.s32 1, %s4
  %s7 = scalar_select 0, %s6, %s4
  $region1: #{actor_forward.1} parent=0
    #allocation2 [shape = 'u8[2048]{0}', space=vmem, size = 0x800, scoped, tag = 'output window, operand 0, single buffered']
    #allocation3 [shape = 's32[1]{0}', space=sflag, size = 0x4, scoped, tag = 'scoped memory for actor_forward.1']
    %8 = vsyncpa [#allocation3], 0
    // Predicated region
    $region2: #{actor_forward.1} parent=1 // pred_check
      _
    $region3: #{actor_forward.1} parent=1 // pred_check_branch
      %10 = sbr.rel (0) target = $region5
    $region4: #{actor_forward.1} parent=1 // pred_region
      _
    $region5: #{actor_forward.1} parent=1 // pred_fallthru
      _
    // Predicated region
    $region6: #{actor_forward.1} parent=1 // pred_check
      _
    $region7: #{actor_forward.1} parent=1 // pred_check_branch
      %12 = sbr.rel (0) target = $region9
    $region8: #{actor_forward.1} parent=1 // pred_region
      _
    $region9: #{actor_forward.1} parent=1 // pred_fallthru
      _
    // Predicated region
    $region10: #{actor_forward.1} parent=1 // pred_check
      _
    $region11: #{actor_forward.1} parent=1 // pred_check_branch
      %14 = sbr.rel (0) target = $region13
    $region12: #{actor_forward.1} parent=1 // pred_region
      _
    $region13: #{actor_forward.1} parent=1 // pred_fallthru
      _
    %v15 = vld [vmem:[%s0] sm:$0xff]
    %v16 = vld [vmem:[%s0 + $0x8] sm:$0xff]
    %v17 = vld [vmem:[%s1] sm:$0xff]
    %v18 = vld [vmem:[%s1 + $0x8] sm:$0xff]
    %v19 = vld [vmem:[%s1 + $0x10] sm:$0xff]
    %v20 = vld [vmem:[%s1 + $0x18] sm:$0xff]
    %v21 = vld [vmem:[%s2] sm:$0xf]
    %23 = vset.pattern.permute.xlu0 16
    %24 = vperm.xlu0 %23, %v17
    %v25 = vpop.permute.xlu0 %24
    %28 = vset.pattern.permute.xlu0 16
    %29 = vperm.xlu0 %28, %v18
    %v30 = vpop.permute.xlu0 %29
    %33 = vset.pattern.permute.xlu0 16
    %34 = vperm.xlu0 %33, %v19
    %v35 = vpop.permute.xlu0 %34
    %38 = vset.pattern.permute.xlu0 16
    %39 = vperm.xlu0 %38, %v20
    %v40 = vpop.permute.xlu0 %39
    %vm42 = vcmask 130048
    %v43 = vsel %vm42, %v17, 0
    %v45 = vsel %vm42, %v18, 0
    %v47 = vsel %vm42, %v19, 0
    %v49 = vsel %vm42, %v20, 0
    %51 = vmatprep.subr.mxu0 0.0
    %52 = vmatpush1.msra.mxu0 0.0
    %53 = vmatprep.subr.mxu0 0.0
    %54 = vmatpush1.msra.mxu0 0.0
    %55 = vmatprep.subr.mxu0 0.0
    %56 = vmatpush1.msra.mxu0 0.0
    %57 = vmatprep.subr.mxu0 0.0
    %58 = vmatpush1.msra.mxu0 0.0
    %59 = vmatprep.subr.mxu0 0.0
    %60 = vmatpush1.msra.mxu0 0.0
    %61 = vmatprep.subr.mxu0 0.0
    %62 = vmatpush1.msra.mxu0 0.0
    %63 = vmatprep.subr.mxu0 0.0
    %64 = vmatpush1.msra.mxu0 0.0
    %65 = vmatprep.subr.mxu0 0.0
    %66 = vmatpush1.msra.mxu0 0.0
    %67 = vmatprep.subr.mxu0 0.0
    %68 = vmatpush1.msra.mxu0 0.0
    %69 = vmatprep.subr.mxu0 0.0
    %70 = vmatpush1.msra.mxu0 0.0
    %71 = vmatprep.subr.mxu0 0.0
    %72 = vmatpush1.msra.mxu0 0.0
    %73 = vmatprep.subr.mxu0 0.0
    %74 = vmatpush1.msra.mxu0 0.0
    %75 = vmatprep.subr.mxu0 0.0
    %76 = vmatpush1.msra.mxu0 0.0
    %77 = vmatprep.subr.mxu0 0.0
    %78 = vmatpush1.msra.mxu0 0.0
    %79 = vmatprep.subr.mxu0 0.0
    %80 = vmatpush1.msra.mxu0 %v16
    %81 = vmatprep.subr.mxu0 0.0
    %82 = vmatpush1.msra.mxu0 %v15
    %83 = vmatprep.subr.mxu0 0.0
    %84 = vmatpush2.msra.mxu0 0.0
    %85 = vmatprep.subr.mxu0 0.0
    %86 = vmatpush2.msra.mxu0 0.0
    %87 = vmatprep.subr.mxu0 0.0
    %88 = vmatpush2.msra.mxu0 0.0
    %89 = vmatprep.subr.mxu0 0.0
    %90 = vmatpush2.msra.mxu0 0.0
    %91 = vmatprep.subr.mxu0 0.0
    %92 = vmatpush2.msra.mxu0 0.0
    %93 = vmatprep.subr.mxu0 0.0
    %94 = vmatpush2.msra.mxu0 0.0
    %95 = vmatprep.subr.mxu0 0.0
    %96 = vmatpush2.msra.mxu0 0.0
    %97 = vmatprep.subr.mxu0 0.0
    %98 = vmatpush2.msra.mxu0 0.0
    %99 = vmatprep.subr.mxu0 0.0
    %100 = vmatpush2.msra.mxu0 0.0
    %101 = vmatprep.subr.mxu0 0.0
    %102 = vmatpush2.msra.mxu0 0.0
    %103 = vmatprep.subr.mxu0 0.0
    %104 = vmatpush2.msra.mxu0 0.0
    %105 = vmatprep.subr.mxu0 0.0
    %106 = vmatpush2.msra.mxu0 0.0
    %107 = vmatprep.subr.mxu0 0.0
    %108 = vmatpush2.msra.mxu0 0.0
    %109 = vmatprep.subr.mxu0 0.0
    %110 = vmatpush2.msra.mxu0 0.0
    %111 = vmatprep.subr.mxu0 0.0
    %112 = vmatpush2.msra.mxu0 0.0
    %113 = vmatprep.subr.mxu0 0.0
    %114 = vmatpush2.msra.mxu0 0.0
    %115 = vmatprep.mubr.f32.mxu0 0.0
    %116 = vmatmul.mubr.f32.gmra.mxu0 %v43
    %v117 = vpop.f32.mrf.mxu0
    %v118 = vadd.f32 %v25, %v117
    %v119 = vpop.f32.mrf.mxu0
    %120 = vmatprep.mubr.f32.mxu0 0.0
    %121 = vmatmul.mubr.f32.gmra.mxu0 %v45
    %v122 = vpop.f32.mrf.mxu0
    %v123 = vadd.f32 %v30, %v122
    %v124 = vpop.f32.mrf.mxu0
    %125 = vmatprep.mubr.f32.mxu0 0.0
    %126 = vmatmul.mubr.f32.gmra.mxu0 %v47
    %v127 = vpop.f32.mrf.mxu0
    %v128 = vadd.f32 %v35, %v127
    %v129 = vpop.f32.mrf.mxu0
    %130 = vmatprep.mubr.f32.mxu0 0.0
    %131 = vmatmul.mubr.f32.gmra.mxu0 %v49
    %v132 = vpop.f32.mrf.mxu0
    %v133 = vadd.f32 %v40, %v132
    %v134 = vpop.f32.mrf.mxu0
    %135 = vdwg.mxu0
    %v136 = vtanh.pop %v118
    %v137 = vtanh.pop %v123
    %v138 = vtanh.pop %v128
    %v139 = vtanh.pop %v133
    %141 = vset.pattern.permute.xlu0 32
    %142 = vperm.xlu0 %141, %v21
    %v143 = vpop.permute.xlu0 %142
    %vm145 = vcmask 261120
    %v146 = vsel %vm145, %v21, 0
    %148 = vmatprep.subr.mxu0 0.0
    %149 = vmatpush1.msra.mxu0 0.0
    %150 = vmatprep.subr.mxu0 0.0
    %151 = vmatpush1.msra.mxu0 0.0
    %152 = vmatprep.subr.mxu0 0.0
    %153 = vmatpush1.msra.mxu0 0.0
    %154 = vmatprep.subr.mxu0 0.0
    %155 = vmatpush1.msra.mxu0 0.0
    %156 = vmatprep.subr.mxu0 0.0
    %157 = vmatpush1.msra.mxu0 0.0
    %158 = vmatprep.subr.mxu0 0.0
    %159 = vmatpush1.msra.mxu0 0.0
    %160 = vmatprep.subr.mxu0 0.0
    %161 = vmatpush1.msra.mxu0 0.0
    %162 = vmatprep.subr.mxu0 0.0
    %163 = vmatpush1.msra.mxu0 0.0
    %164 = vmatprep.subr.mxu0 0.0
    %165 = vmatpush1.msra.mxu0 0.0
    %166 = vmatprep.subr.mxu0 0.0
    %167 = vmatpush1.msra.mxu0 0.0
    %168 = vmatprep.subr.mxu0 0.0
    %169 = vmatpush1.msra.mxu0 0.0
    %170 = vmatprep.subr.mxu0 0.0
    %171 = vmatpush1.msra.mxu0 0.0
    %172 = vmatprep.subr.mxu0 0.0
    %173 = vmatpush1.msra.mxu0 %v139
    %174 = vmatprep.subr.mxu0 0.0
    %175 = vmatpush1.msra.mxu0 %v138
    %176 = vmatprep.subr.mxu0 0.0
    %177 = vmatpush1.msra.mxu0 %v137
    %178 = vmatprep.subr.mxu0 0.0
    %179 = vmatpush1.msra.mxu0 %v136
    %180 = vmatprep.subr.mxu0 0.0
    %181 = vmatpush2.msra.mxu0 0.0
    %182 = vmatprep.subr.mxu0 0.0
    %183 = vmatpush2.msra.mxu0 0.0
    %184 = vmatprep.subr.mxu0 0.0
    %185 = vmatpush2.msra.mxu0 0.0
    %186 = vmatprep.subr.mxu0 0.0
    %187 = vmatpush2.msra.mxu0 0.0
    %188 = vmatprep.subr.mxu0 0.0
    %189 = vmatpush2.msra.mxu0 0.0
    %190 = vmatprep.subr.mxu0 0.0
    %191 = vmatpush2.msra.mxu0 0.0
    %192 = vmatprep.subr.mxu0 0.0
    %193 = vmatpush2.msra.mxu0 0.0
    %194 = vmatprep.subr.mxu0 0.0
    %195 = vmatpush2.msra.mxu0 0.0
    %196 = vmatprep.subr.mxu0 0.0
    %197 = vmatpush2.msra.mxu0 0.0
    %198 = vmatprep.subr.mxu0 0.0
    %199 = vmatpush2.msra.mxu0 0.0
    %200 = vmatprep.subr.mxu0 0.0
    %201 = vmatpush2.msra.mxu0 0.0
    %202 = vmatprep.subr.mxu0 0.0
    %203 = vmatpush2.msra.mxu0 0.0
    %204 = vmatprep.subr.mxu0 0.0
    %205 = vmatpush2.msra.mxu0 0.0
    %206 = vmatprep.subr.mxu0 0.0
    %207 = vmatpush2.msra.mxu0 0.0
    %208 = vmatprep.subr.mxu0 0.0
    %209 = vmatpush2.msra.mxu0 0.0
    %210 = vmatprep.subr.mxu0 0.0
    %211 = vmatpush2.msra.mxu0 0.0
    %212 = vmatprep.mubr.f32.mxu0 0.0
    %213 = vmatmul.mubr.f32.gmra.mxu0 %v146
    %v214 = vpop.f32.mrf.mxu0
    %v215 = vadd.f32 %v143, %v214
    %v216 = vpop.f32.mrf.mxu0
    %217 = vdwg.mxu0
    %vm218 = vcmask 60416
    %219 = vst.msk [vmem:[#allocation2] sm:$0xf] %vm218, %v215
    // Predicated region
    $region14: #{actor_forward.1} parent=1 // pred_check
      _
    $region15: #{actor_forward.1} parent=1 // pred_check_branch
      %221 = sbr.rel (0) target = $region17
    $region16: #{actor_forward.1} parent=1 // pred_region
      %s223 = ssub.s32 64, 64
      %224 = vsyncadd [#allocation3], %s223
      %s226 = sshll.u32 [#allocation2], 4
      %s227 = int_to_ptr.vmem [resolvable:$true] %s226
      %229 = dma.vmem_to_hbm [thread:$0]  %s227, 64, %s3, [#allocation3]
    $region17: #{actor_forward.1} parent=1 // pred_fallthru
      _
    // Predicated region
    $region18: #{actor_forward.1} parent=1 // pred_check
      _
    $region19: #{actor_forward.1} parent=1 // pred_check_branch
      %231 = sbr.rel (0) target = $region21
    $region20: #{actor_forward.1} parent=1 // pred_region
      %232 = dma.done [#allocation3], 64
    $region21: #{actor_forward.1} parent=1 // pred_fallthru
      _
    %233 = vsyncpa [#allocation3], 1

</llo_original>
